<compile_context>
chip_gen: v6e
topology: v6e:2x2x1
jax: 0.10.0
libtpu: 0.0.40
codegen_flags: <defaults>
</compile_context>

<pallas_src>
import functools

import jax
import jax.numpy as jnp
from jax.experimental import pallas as pl
from jax.experimental.pallas import tpu as pltpu


def _cont_embed_kernel(x_ref, w1_ref, b1_ref, w2_ref, b2_ref, o_ref, *, mxu_dtype):
    # x_ref:  (tm, P)       packed input rows (native input dtype)
    # w1_ref: (P, P*H)      first Linear weight, block-diagonal when P > 1 (mxu_dtype)
    # b1_ref: (1, P*H)      first Linear bias, tiled (f32)
    # w2_ref: (P*H, P*E)    second Linear weight, block-diagonal when P > 1 (mxu_dtype)
    # b2_ref: (1, P*E)      second Linear bias, tiled (f32)
    # o_ref:  (tm, P*E)     lane-dense output tile
    x = x_ref[...]
    if x.shape[1] == 1:
        # P == 1: Linear(1, H) is an outer-product broadcast (VPU), no K=1 matmul.
        h = x.astype(jnp.float32) * w1_ref[...].astype(jnp.float32) + b1_ref[...]
    else:
        h = jnp.dot(x.astype(mxu_dtype), w1_ref[...],
                    preferred_element_type=jnp.float32) + b1_ref[...]
    h = jnp.maximum(h, 0.0)                                        # ReLU (VPU)
    y = jnp.dot(h.astype(mxu_dtype), w2_ref[...],                  # MXU, f32 accumulate
                preferred_element_type=jnp.float32)
    o_ref[...] = (y + b2_ref[...]).astype(o_ref.dtype)


def continuous_embedding(x, w1, b1, w2, b2, *, tm=8192,
                         out_dtype=jnp.float32, compute_dtype=jnp.float32):
    """x: [B, S] -> [B, S, E]  (ContinuousEmbedding forward, model='ffn').

    Weights use (in, out) layout: w1: (1, H), b1: (H,)/(1, H), w2: (H, E), b2: (E,)/(1, E).
    out_dtype:     output element dtype (bf16 recommended for inference callers).
    compute_dtype: MXU operand dtype (bf16 recommended on v5e); accumulation is f32.
    """
    B, S = x.shape
    H, E = w2.shape
    N = B * S

    # Lane packing: P logical rows per physical row so the output tile is >= 128 lanes.
    if E % 128 == 0:
        P = 1                       # already lane-dense
    elif 128 % E == 0:
        P = 128 // E
    else:
        P = 1  # TODO(synk): E that neither divides nor is a multiple of 128 stays
               # lane-sparse (correct, but masked sub-128-lane stores).

    # Parameter prep: block-diagonal weights / tiled biases; MXU operands in compute_dtype.
    w1 = w1.reshape(1, H).astype(jnp.float32)
    b1 = b1.reshape(1, H).astype(jnp.float32)
    w2 = w2.reshape(H, E).astype(jnp.float32)
    b2 = b2.reshape(1, E).astype(jnp.float32)
    if P > 1:
        eye = jnp.eye(P, dtype=jnp.float32)
        w1_p = jnp.kron(eye, w1)          # (P, P*H) block diagonal
        w2_p = jnp.kron(eye, w2)          # (P*H, P*E) block diagonal
        b1_p = jnp.tile(b1, (1, P))       # (1, P*H)
        b2_p = jnp.tile(b2, (1, P))       # (1, P*E)
    else:
        w1_p, b1_p, w2_p, b2_p = w1, b1, w2, b2
    w1_p = w1_p.astype(compute_dtype)
    w2_p = w2_p.astype(compute_dtype)

    hid_w = P * H
    out_w = P * E

    # Row tiling: cdiv grid with Pallas-masked partial boundary block (no wrapper padding).
    M = pl.cdiv(N, P)                                   # packed rows
    tm = max(8, (int(tm) // 8) * 8)                     # multiple of 8 sublanes
    quarter = max(8, ((pl.cdiv(M, 4) + 7) // 8) * 8)    # keep >= ~4 blocks (v7x: 2 TCs)
    tm_eff = min(tm, quarter)
    if M <= tm_eff:
        tm_eff = M                                      # single block == full array (legal)
    grid = (pl.cdiv(M, tm_eff),)

    # Pack input rows: (N,) -> (M, P) row-major (free reshape; pad <= P-1 scalars).
    x_flat = x.reshape(-1)                              # keep native dtype; upcast in-kernel
    if M * P != N:
        x_flat = jnp.pad(x_flat, (0, M * P - N))
    x_packed = x_flat.reshape(M, P)

    out_bytes = jnp.dtype(out_dtype).itemsize
    cd_bytes = jnp.dtype(compute_dtype).itemsize
    cost = pl.CostEstimate(
        flops=2 * N * H * (E + 1),
        transcendentals=0,
        bytes_accessed=(N * x.dtype.itemsize            # input read
                        + N * E * out_bytes             # output write (dominant)
                        + (P * hid_w + hid_w * out_w) * cd_bytes
                        + (hid_w + out_w) * 4),
    )

    kernel = functools.partial(_cont_embed_kernel, mxu_dtype=compute_dtype)

    out_packed = pl.pallas_call(
        kernel,
        out_shape=jax.ShapeDtypeStruct((M, out_w), out_dtype),
        grid=grid,
        in_specs=[
            pl.BlockSpec((tm_eff, P), lambda i: (i, 0)),      # packed x tile
            pl.BlockSpec((P, hid_w), lambda i: (0, 0)),       # w1 (resident)
            pl.BlockSpec((1, hid_w), lambda i: (0, 0)),       # b1
            pl.BlockSpec((hid_w, out_w), lambda i: (0, 0)),   # w2 (resident)
            pl.BlockSpec((1, out_w), lambda i: (0, 0)),       # b2
        ],
        out_specs=pl.BlockSpec((tm_eff, out_w), lambda i: (i, 0)),
        compiler_params=pltpu.CompilerParams(
            dimension_semantics=("parallel",),
            vmem_limit_bytes=32 * 1024 * 1024,
        ),
        cost_estimate=cost,
    )(x_packed, w1_p, b1_p, w2_p, b2_p)

    # (M, P*E) row-major is byte-identical to (M*P, E) row-major: reshape is free.
    out_flat = out_packed.reshape(M * P, E)
    if M * P != N:                                       # only when P does not divide N
        out_flat = out_flat[:N]
    return out_flat.reshape(B, S, E)


def init_params(key, hidden_dim=32, embedding_dim=32):
    """Deterministic synthetic init (PyTorch-style uniform bounds), (in, out) layout."""
    k1, k2, k3, k4 = jax.random.split(key, 4)
    bound1 = 1.0 / jnp.sqrt(1.0)            # fan_in = 1
    bound2 = 1.0 / jnp.sqrt(hidden_dim)     # fan_in = hidden_dim
    w1 = jax.random.uniform(k1, (1, hidden_dim), jnp.float32, -bound1, bound1)
    b1 = jax.random.uniform(k2, (1, hidden_dim), jnp.float32, -bound1, bound1)
    w2 = jax.random.uniform(k3, (hidden_dim, embedding_dim), jnp.float32,
                            -bound2, bound2)
    b2 = jax.random.uniform(k4, (1, embedding_dim), jnp.float32,
                            -bound2, bound2)
    return w1, b1, w2, b2


def _reference(x, w1, b1, w2, b2):
    """Pure-JAX reference with HIGHEST-precision matmuls."""
    B, S = x.shape
    xf = x.reshape(-1, 1).astype(jnp.float32)
    h = jnp.maximum(jnp.dot(xf, w1, precision=jax.lax.Precision.HIGHEST) + b1, 0.0)
    y = jnp.dot(h, w2, precision=jax.lax.Precision.HIGHEST) + b2
    return y.reshape(B, S, -1)


if __name__ == "__main__":
    key = jax.random.PRNGKey(0)
    kx1, kx2, kx3, kp1, kp2 = jax.random.split(key, 5)

    # Case 1: H=E=32 (lane-packed P=4 path), exact tiling, f32 output.
    H, E = 32, 32
    w1, b1, w2, b2 = init_params(kp1, hidden_dim=H, embedding_dim=E)
    B, S = 2, 8
    x = jax.random.normal(kx1, (B, S), dtype=jnp.float32)
    out = jax.block_until_ready(continuous_embedding(x, w1, b1, w2, b2))
    ref = _reference(x, w1, b1, w2, b2)
    assert out.shape == (B, S, E)
    assert jnp.allclose(out, ref, atol=1e-3, rtol=1e-3)

    # Case 2: ragged rows + small tile -> partial boundary block, tiny (<=3 elem) pad.
    B2, S2 = 3, 50
    x2 = jax.random.normal(kx2, (B2, S2), dtype=jnp.float32)
    out2 = jax.block_until_ready(continuous_embedding(x2, w1, b1, w2, b2, tm=8))
    ref2 = _reference(x2, w1, b1, w2, b2)
    assert out2.shape == (B2, S2, E)
    assert jnp.allclose(out2, ref2, atol=1e-3, rtol=1e-3)

    # Case 3: module defaults H=E=128 (P=1 path), bf16 MXU operands + bf16 output.
    H3, E3 = 128, 128
    w1c, b1c, w2c, b2c = init_params(kp2, hidden_dim=H3, embedding_dim=E3)
    B3, S3 = 2, 8
    x3 = jax.random.normal(kx3, (B3, S3), dtype=jnp.float32)
    out3 = jax.block_until_ready(
        continuous_embedding(x3, w1c, b1c, w2c, b2c,
                             out_dtype=jnp.bfloat16, compute_dtype=jnp.bfloat16))
    ref3 = _reference(x3, w1c, b1c, w2c, b2c)
    assert out3.shape == (B3, S3, E3)
    assert out3.dtype == jnp.bfloat16
    assert jnp.allclose(out3.astype(jnp.float32), ref3, atol=1e-1, rtol=1e-1)

    print("KERNEL_OK")
</pallas_src>

<mosaic_0001>
module attributes {stable_mosaic.version = 11 : i64} {
  func.func @_cont_embed_kernel(%arg0: i32, %arg1: memref<4x4xf32, #tpu.memory_space<vmem>>, %arg2: memref<4x128xf32, #tpu.memory_space<vmem>>, %arg3: memref<1x128xf32, #tpu.memory_space<vmem>>, %arg4: memref<128x128xf32, #tpu.memory_space<vmem>>, %arg5: memref<1x128xf32, #tpu.memory_space<vmem>>, %arg6: memref<4x128xf32, #tpu.memory_space<vmem>>) attributes {dimension_semantics = [#tpu.dimension_semantics<parallel>], iteration_bounds = array<i64: 1>, scalar_prefetch = 0 : i64, scratch_operands = 0 : i64, tpu.core_type = #tpu.core_type<tc>, window_params = [{transform_indices = @transform_0, window_bounds = array<i64: 4, 4>}, {pipeline_mode = #tpu.pipeline_mode<synchronous>, transform_indices = @transform_1, window_bounds = array<i64: 4, 128>}, {pipeline_mode = #tpu.pipeline_mode<synchronous>, transform_indices = @transform_2, window_bounds = array<i64: 1, 128>}, {pipeline_mode = #tpu.pipeline_mode<synchronous>, transform_indices = @transform_3, window_bounds = array<i64: 128, 128>}, {pipeline_mode = #tpu.pipeline_mode<synchronous>, transform_indices = @transform_4, window_bounds = array<i64: 1, 128>}, {transform_indices = @transform_5, window_bounds = array<i64: 4, 128>}]} {
    %c0 = arith.constant 0 : index
    %c0_0 = arith.constant 0 : index
    %0 = vector.load %arg1[%c0, %c0_0] : memref<4x4xf32, #tpu.memory_space<vmem>>, vector<4x4xf32>
    %c0_1 = arith.constant 0 : index
    %c0_2 = arith.constant 0 : index
    %1 = vector.load %arg2[%c0_1, %c0_2] : memref<4x128xf32, #tpu.memory_space<vmem>>, vector<4x128xf32>
    %cst = arith.constant dense<0.000000e+00> : vector<4x128xf32>
    %2 = tpu.matmul %0, %1, %cst {dimension_numbers = #tpu.dot_dimension_numbers<[1], [0], [0], [1], [0, 0, 1, 1], [], []>} : vector<4x4xf32>, vector<4x128xf32>, vector<4x128xf32> -> vector<4x128xf32>
    %c0_3 = arith.constant 0 : index
    %c0_4 = arith.constant 0 : index
    %3 = vector.load %arg3[%c0_3, %c0_4] : memref<1x128xf32, #tpu.memory_space<vmem>>, vector<1x128xf32>
    %4 = vector.broadcast %3 : vector<1x128xf32> to vector<4x128xf32>
    %5 = arith.addf %2, %4 : vector<4x128xf32>
    %cst_5 = arith.constant 0.000000e+00 : f32
    %6 = vector.broadcast %cst_5 : f32 to vector<4x128xf32>
    %7 = arith.maximumf %5, %6 : vector<4x128xf32>
    %c0_6 = arith.constant 0 : index
    %c0_7 = arith.constant 0 : index
    %8 = vector.load %arg4[%c0_6, %c0_7] : memref<128x128xf32, #tpu.memory_space<vmem>>, vector<128x128xf32>
    %cst_8 = arith.constant dense<0.000000e+00> : vector<4x128xf32>
    %9 = tpu.matmul %7, %8, %cst_8 {dimension_numbers = #tpu.dot_dimension_numbers<[1], [0], [0], [1], [0, 0, 1, 1], [], []>} : vector<4x128xf32>, vector<128x128xf32>, vector<4x128xf32> -> vector<4x128xf32>
    %c0_9 = arith.constant 0 : index
    %c0_10 = arith.constant 0 : index
    %10 = vector.load %arg5[%c0_9, %c0_10] : memref<1x128xf32, #tpu.memory_space<vmem>>, vector<1x128xf32>
    %11 = vector.broadcast %10 : vector<1x128xf32> to vector<4x128xf32>
    %12 = arith.addf %9, %11 : vector<4x128xf32>
    %c0_11 = arith.constant 0 : index
    %c0_12 = arith.constant 0 : index
    %13 = vector.load %arg6[%c0_11, %c0_12] : memref<4x128xf32, #tpu.memory_space<vmem>>, vector<4x128xf32>
    tpu.vector_store %arg6[%c0_11, %c0_12], %12 {strides = array<i32>} : memref<4x128xf32, #tpu.memory_space<vmem>>, vector<4x128xf32>,
    return
  }
  func.func @transform_0(%arg0: i32) -> (i32, i32) {
    %c0_i32 = arith.constant 0 : i32
    %c0_i32_0 = arith.constant 0 : i32
    return %arg0, %c0_i32 : i32, i32
  }
  func.func @transform_1(%arg0: i32) -> (i32, i32) {
    %c0_i32 = arith.constant 0 : i32
    %c0_i32_0 = arith.constant 0 : i32
    %c0_i32_1 = arith.constant 0 : i32
    return %c0_i32, %c0_i32_0 : i32, i32
  }
  func.func @transform_2(%arg0: i32) -> (i32, i32) {
    %c0_i32 = arith.constant 0 : i32
    %c0_i32_0 = arith.constant 0 : i32
    %c0_i32_1 = arith.constant 0 : i32
    return %c0_i32, %c0_i32_0 : i32, i32
  }
  func.func @transform_3(%arg0: i32) -> (i32, i32) {
    %c0_i32 = arith.constant 0 : i32
    %c0_i32_0 = arith.constant 0 : i32
    %c0_i32_1 = arith.constant 0 : i32
    return %c0_i32, %c0_i32_0 : i32, i32
  }
  func.func @transform_4(%arg0: i32) -> (i32, i32) {
    %c0_i32 = arith.constant 0 : i32
    %c0_i32_0 = arith.constant 0 : i32
    %c0_i32_1 = arith.constant 0 : i32
    return %c0_i32, %c0_i32_0 : i32, i32
  }
  func.func @transform_5(%arg0: i32) -> (i32, i32) {
    %c0_i32 = arith.constant 0 : i32
    %c0_i32_0 = arith.constant 0 : i32
    return %arg0, %c0_i32 : i32, i32
  }
}

</mosaic_0001>

<llo_original>
// kernel: tpu_custom_call.1
$region0: #{tpu_custom_call.1}
  #allocation0 [shape = 'u32[]', space=smem, size = 0x4, offset = 0x4, fixed_abs, tag = 'smem constant byte address 0x4 - core index']
  #allocation1 [shape = 'u32[144,128]{1,0:T(1,128)}', space=vmem, size = 0x12000, scoped, tag = 'internal scratch']
  %s0 = inlined_call_operand.hbm [shape: f32[4,4], index: 0, kind: input, shape index: {}]
  %s1 = inlined_call_operand.hbm [shape: f32[4,128], index: 1, kind: input, shape index: {}]
  %s2 = inlined_call_operand.vmem [shape: f32[1,128], index: 2, kind: input, shape index: {}]
  %s3 = inlined_call_operand.hbm [shape: f32[128,128], index: 3, kind: input, shape index: {}]
  %s4 = inlined_call_operand.vmem [shape: f32[1,128], index: 4, kind: input, shape index: {}]
  %s5 = inlined_call_operand.hbm [shape: f32[4,128], index: 5, kind: output, shape index: {}]
  %s6 = sld [smem:[#allocation0]]
  $region42: #{tpu_custom_call.1} parent=0
    _
  %s8 = ssub.s32 1, %s6
  %s9 = scalar_select 0, %s8, %s6
  $region1: #{tpu_custom_call.1} parent=0
    #allocation2 [shape = 'u8[2048]{0}', space=vmem, size = 0x800, scoped, tag = 'input window, operand 0, single buffered']
    #allocation3 [shape = 's32[1]{0}', space=sflag, size = 0x4, scoped, tag = 'scoped memory for tpu_custom_call.1']
    #allocation4 [shape = 's32[1]{0}', space=sflag, size = 0x4, scoped, tag = 'scoped memory for tpu_custom_call.1']
    #allocation5 [shape = 'u8[2048]{0}', space=vmem, size = 0x800, scoped, tag = 'input window, operand 1, single buffered']
    #allocation6 [shape = 's32[1]{0}', space=sflag, size = 0x4, scoped, tag = 'scoped memory for tpu_custom_call.1']
    #allocation7 [shape = 'u8[65536]{0}', space=vmem, size = 0x10000, scoped, tag = 'input window, operand 3, single buffered']
    #allocation8 [shape = 'u8[2048]{0}', space=vmem, size = 0x800, scoped, tag = 'output window, operand 0, single buffered']
    %10 = vsyncpa [#allocation3], 0
    %11 = vsyncpa [#allocation6], 0
    %12 = vsyncpa [#allocation4], 0
    // Predicated region
    $region2: #{tpu_custom_call.1} parent=1 // pred_check
      _
    $region3: #{tpu_custom_call.1} parent=1 // pred_check_branch
      %14 = sbr.rel (0) target = $region5
    $region4: #{tpu_custom_call.1} parent=1 // pred_region
      %s16 = ssub.s32 64, 64
      %17 = vsyncadd [#allocation3], %s16
      %s19 = sshll.u32 [#allocation2], 4
      %s20 = int_to_ptr.vmem [resolvable:$true] %s19
      %22 = dma.hbm_to_vmem [thread:$0]  %s0, 64, %s20, [#allocation3]
    $region5: #{tpu_custom_call.1} parent=1 // pred_fallthru
      _
    // Predicated region
    $region6: #{tpu_custom_call.1} parent=1 // pred_check
      _
    $region7: #{tpu_custom_call.1} parent=1 // pred_check_branch
      %24 = sbr.rel (0) target = $region9
    $region8: #{tpu_custom_call.1} parent=1 // pred_region
      %s26 = ssub.s32 64, 64
      %27 = vsyncadd [#allocation6], %s26
      %s29 = sshll.u32 [#allocation5], 4
      %s30 = int_to_ptr.vmem [resolvable:$true] %s29
      %32 = dma.hbm_to_vmem [thread:$0]  %s1, 64, %s30, [#allocation6]
    $region9: #{tpu_custom_call.1} parent=1 // pred_fallthru
      _
    // Predicated region
    $region10: #{tpu_custom_call.1} parent=1 // pred_check
      _
    $region11: #{tpu_custom_call.1} parent=1 // pred_check_branch
      %34 = sbr.rel (0) target = $region13
    $region12: #{tpu_custom_call.1} parent=1 // pred_region
      _
    $region13: #{tpu_custom_call.1} parent=1 // pred_fallthru
      _
    // Predicated region
    $region14: #{tpu_custom_call.1} parent=1 // pred_check
      _
    $region15: #{tpu_custom_call.1} parent=1 // pred_check_branch
      %36 = sbr.rel (0) target = $region17
    $region16: #{tpu_custom_call.1} parent=1 // pred_region
      %s38 = ssub.s32 2048, 2048
      %39 = vsyncadd [#allocation6], %s38
      %s40 = sshll.u32 [#allocation7], 4
      %s41 = int_to_ptr.vmem [resolvable:$true] %s40
      %46 = dma.hbm_to_vmem [thread:$0]  %s3, 2048, %s41, [#allocation6], 128, 128, 8
    $region17: #{tpu_custom_call.1} parent=1 // pred_fallthru
      _
    // Predicated region
    $region18: #{tpu_custom_call.1} parent=1 // pred_check
      _
    $region19: #{tpu_custom_call.1} parent=1 // pred_check_branch
      %48 = sbr.rel (0) target = $region21
    $region20: #{tpu_custom_call.1} parent=1 // pred_region
      _
    $region21: #{tpu_custom_call.1} parent=1 // pred_fallthru
      _
    // Predicated region
    $region22: #{tpu_custom_call.1} parent=1 // pred_check
      _
    $region23: #{tpu_custom_call.1} parent=1 // pred_check_branch
      %50 = sbr.rel (0) target = $region25
    $region24: #{tpu_custom_call.1} parent=1 // pred_region
      %51 = dma.done [#allocation3], 64
    $region25: #{tpu_custom_call.1} parent=1 // pred_fallthru
      _
    // Predicated region
    $region26: #{tpu_custom_call.1} parent=1 // pred_check
      _
    $region27: #{tpu_custom_call.1} parent=1 // pred_check_branch
      %53 = sbr.rel (0) target = $region29
    $region28: #{tpu_custom_call.1} parent=1 // pred_region
      %54 = dma.done [#allocation6], 64
    $region29: #{tpu_custom_call.1} parent=1 // pred_fallthru
      _
    // Predicated region
    $region30: #{tpu_custom_call.1} parent=1 // pred_check
      _
    $region31: #{tpu_custom_call.1} parent=1 // pred_check_branch
      %56 = sbr.rel (0) target = $region33
    $region32: #{tpu_custom_call.1} parent=1 // pred_region
      %57 = dma.done [#allocation6], 2048
    $region33: #{tpu_custom_call.1} parent=1 // pred_fallthru
      _
    %v58 = vld [vmem:[#allocation2] sm:$0xf]
    %v59 = vld [vmem:[#allocation5] sm:$0xf]
    %v60 = vld [vmem:[%s2] sm:$0x1]
    %v62 = vlaneseq
    %v63 = vshrl.u32 %v62, 7
    %v64 = vsub.s32 0, %v63
    %v65 = vrot.slane %v60, %v64
    %vm67 = vcmask 31744
    %v69 = vsel %vm67, %v58, 0
    %vm71 = vcmask 1043456
    %v73 = vsel %vm71, %v59, 0
    %75 = vmatprep.subr.mxu0 0.0
    %76 = vmatpush1.msra.mxu0 0.0
    %77 = vmatprep.subr.mxu0 0.0
    %78 = vmatpush1.msra.mxu0 0.0
    %79 = vmatprep.subr.mxu0 0.0
    %80 = vmatpush1.msra.mxu0 0.0
    %81 = vmatprep.subr.mxu0 0.0
    %82 = vmatpush1.msra.mxu0 0.0
    %83 = vmatprep.subr.mxu0 0.0
    %84 = vmatpush1.msra.mxu0 0.0
    %85 = vmatprep.subr.mxu0 0.0
    %86 = vmatpush1.msra.mxu0 0.0
    %87 = vmatprep.subr.mxu0 0.0
    %88 = vmatpush1.msra.mxu0 0.0
    %89 = vmatprep.subr.mxu0 0.0
    %90 = vmatpush1.msra.mxu0 0.0
    %91 = vmatprep.subr.mxu0 0.0
    %92 = vmatpush1.msra.mxu0 0.0
    %93 = vmatprep.subr.mxu0 0.0
    %94 = vmatpush1.msra.mxu0 0.0
    %95 = vmatprep.subr.mxu0 0.0
    %96 = vmatpush1.msra.mxu0 0.0
    %97 = vmatprep.subr.mxu0 0.0
    %98 = vmatpush1.msra.mxu0 0.0
    %99 = vmatprep.subr.mxu0 0.0
    %100 = vmatpush1.msra.mxu0 0.0
    %101 = vmatprep.subr.mxu0 0.0
    %102 = vmatpush1.msra.mxu0 0.0
    %103 = vmatprep.subr.mxu0 0.0
    %104 = vmatpush1.msra.mxu0 0.0
    %105 = vmatprep.subr.mxu0 0.0
    %106 = vmatpush1.msra.mxu0 %v73
    %107 = vmatprep.subr.mxu0 0.0
    %108 = vmatpush2.msra.mxu0 0.0
    %109 = vmatprep.subr.mxu0 0.0
    %110 = vmatpush2.msra.mxu0 0.0
    %111 = vmatprep.subr.mxu0 0.0
    %112 = vmatpush2.msra.mxu0 0.0
    %113 = vmatprep.subr.mxu0 0.0
    %114 = vmatpush2.msra.mxu0 0.0
    %115 = vmatprep.subr.mxu0 0.0
    %116 = vmatpush2.msra.mxu0 0.0
    %117 = vmatprep.subr.mxu0 0.0
    %118 = vmatpush2.msra.mxu0 0.0
    %119 = vmatprep.subr.mxu0 0.0
    %120 = vmatpush2.msra.mxu0 0.0
    %121 = vmatprep.subr.mxu0 0.0
    %122 = vmatpush2.msra.mxu0 0.0
    %123 = vmatprep.subr.mxu0 0.0
    %124 = vmatpush2.msra.mxu0 0.0
    %125 = vmatprep.subr.mxu0 0.0
    %126 = vmatpush2.msra.mxu0 0.0
    %127 = vmatprep.subr.mxu0 0.0
    %128 = vmatpush2.msra.mxu0 0.0
    %129 = vmatprep.subr.mxu0 0.0
    %130 = vmatpush2.msra.mxu0 0.0
    %131 = vmatprep.subr.mxu0 0.0
    %132 = vmatpush2.msra.mxu0 0.0
    %133 = vmatprep.subr.mxu0 0.0
    %134 = vmatpush2.msra.mxu0 0.0
    %135 = vmatprep.subr.mxu0 0.0
    %136 = vmatpush2.msra.mxu0 0.0
    %137 = vmatprep.subr.mxu0 0.0
    %138 = vmatpush2.msra.mxu0 0.0
    %139 = vmatprep.mubr.f32.mxu0 0.0
    %140 = vmatmul.mubr.f32.gmra.mxu0 %v69
    %v141 = vpop.f32.mrf.mxu0
    %v142 = vadd.f32 %v65, %v141
    %v143 = vpop.f32.mrf.mxu0
    %144 = vdwg.mxu0
    %v145 = vmax.f32 %v142, 0.0
    %v146 = vld [vmem:[#allocation7] sm:$0xff]
    %v147 = vld [vmem:[#allocation7 + $0x8] sm:$0xff]
    %v148 = vld [vmem:[#allocation7 + $0x10] sm:$0xff]
    %v149 = vld [vmem:[#allocation7 + $0x18] sm:$0xff]
    %v150 = vld [vmem:[#allocation7 + $0x20] sm:$0xff]
    %v151 = vld [vmem:[#allocation7 + $0x28] sm:$0xff]
    %v152 = vld [vmem:[#allocation7 + $0x30] sm:$0xff]
    %v153 = vld [vmem:[#allocation7 + $0x38] sm:$0xff]
    %v154 = vld [vmem:[#allocation7 + $0x40] sm:$0xff]
    %v155 = vld [vmem:[#allocation7 + $0x48] sm:$0xff]
    %v156 = vld [vmem:[#allocation7 + $0x50] sm:$0xff]
    %v157 = vld [vmem:[#allocation7 + $0x58] sm:$0xff]
    %v158 = vld [vmem:[#allocation7 + $0x60] sm:$0xff]
    %v159 = vld [vmem:[#allocation7 + $0x68] sm:$0xff]
    %v160 = vld [vmem:[#allocation7 + $0x70] sm:$0xff]
    %v161 = vld [vmem:[#allocation7 + $0x78] sm:$0xff]
    %v162 = vld [vmem:[%s4] sm:$0x1]
    %v164 = vlaneseq
    %v165 = vshrl.u32 %v164, 7
    %v166 = vsub.s32 0, %v165
    %v167 = vrot.slane %v162, %v166
    %169 = vmatprep.subr.mxu0 0.0
    %170 = vmatpush1.msra.mxu0 %v161
    %171 = vmatprep.subr.mxu0 0.0
    %172 = vmatpush1.msra.mxu0 %v160
    %173 = vmatprep.subr.mxu0 0.0
    %174 = vmatpush1.msra.mxu0 %v159
    %175 = vmatprep.subr.mxu0 0.0
    %176 = vmatpush1.msra.mxu0 %v158
    %177 = vmatprep.subr.mxu0 0.0
    %178 = vmatpush1.msra.mxu0 %v157
    %179 = vmatprep.subr.mxu0 0.0
    %180 = vmatpush1.msra.mxu0 %v156
    %181 = vmatprep.subr.mxu0 0.0
    %182 = vmatpush1.msra.mxu0 %v155
    %183 = vmatprep.subr.mxu0 0.0
    %184 = vmatpush1.msra.mxu0 %v154
    %185 = vmatprep.subr.mxu0 0.0
    %186 = vmatpush1.msra.mxu0 %v153
    %187 = vmatprep.subr.mxu0 0.0
    %188 = vmatpush1.msra.mxu0 %v152
    %189 = vmatprep.subr.mxu0 0.0
    %190 = vmatpush1.msra.mxu0 %v151
    %191 = vmatprep.subr.mxu0 0.0
    %192 = vmatpush1.msra.mxu0 %v150
    %193 = vmatprep.subr.mxu0 0.0
    %194 = vmatpush1.msra.mxu0 %v149
    %195 = vmatprep.subr.mxu0 0.0
    %196 = vmatpush1.msra.mxu0 %v148
    %197 = vmatprep.subr.mxu0 0.0
    %198 = vmatpush1.msra.mxu0 %v147
    %199 = vmatprep.subr.mxu0 0.0
    %200 = vmatpush1.msra.mxu0 %v146
    %201 = vmatprep.subr.mxu0 0.0
    %202 = vmatpush2.msra.mxu0 0.0
    %203 = vmatprep.subr.mxu0 0.0
    %204 = vmatpush2.msra.mxu0 0.0
    %205 = vmatprep.subr.mxu0 0.0
    %206 = vmatpush2.msra.mxu0 0.0
    %207 = vmatprep.subr.mxu0 0.0
    %208 = vmatpush2.msra.mxu0 0.0
    %209 = vmatprep.subr.mxu0 0.0
    %210 = vmatpush2.msra.mxu0 0.0
    %211 = vmatprep.subr.mxu0 0.0
    %212 = vmatpush2.msra.mxu0 0.0
    %213 = vmatprep.subr.mxu0 0.0
    %214 = vmatpush2.msra.mxu0 0.0
    %215 = vmatprep.subr.mxu0 0.0
    %216 = vmatpush2.msra.mxu0 0.0
    %217 = vmatprep.subr.mxu0 0.0
    %218 = vmatpush2.msra.mxu0 0.0
    %219 = vmatprep.subr.mxu0 0.0
    %220 = vmatpush2.msra.mxu0 0.0
    %221 = vmatprep.subr.mxu0 0.0
    %222 = vmatpush2.msra.mxu0 0.0
    %223 = vmatprep.subr.mxu0 0.0
    %224 = vmatpush2.msra.mxu0 0.0
    %225 = vmatprep.subr.mxu0 0.0
    %226 = vmatpush2.msra.mxu0 0.0
    %227 = vmatprep.subr.mxu0 0.0
    %228 = vmatpush2.msra.mxu0 0.0
    %229 = vmatprep.subr.mxu0 0.0
    %230 = vmatpush2.msra.mxu0 0.0
    %231 = vmatprep.subr.mxu0 0.0
    %232 = vmatpush2.msra.mxu0 0.0
    %233 = vmatprep.mubr.f32.mxu0 0.0
    %234 = vmatmul.mubr.f32.gmra.mxu0 %v145
    %v235 = vpop.f32.mrf.mxu0
    %v236 = vadd.f32 %v167, %v235
    %v237 = vpop.f32.mrf.mxu0
    %238 = vdwg.mxu0
    %239 = vst [vmem:[#allocation8] sm:$0xf] %v236
    // Predicated region
    $region34: #{tpu_custom_call.1} parent=1 // pred_check
      _
    $region35: #{tpu_custom_call.1} parent=1 // pred_check_branch
      %241 = sbr.rel (0) target = $region37
    $region36: #{tpu_custom_call.1} parent=1 // pred_region
      %s243 = ssub.s32 64, 64
      %244 = vsyncadd [#allocation4], %s243
      %s246 = sshll.u32 [#allocation8], 4
      %s247 = int_to_ptr.vmem [resolvable:$true] %s246
      %249 = dma.vmem_to_hbm [thread:$0]  %s247, 64, %s5, [#allocation4]
    $region37: #{tpu_custom_call.1} parent=1 // pred_fallthru
      _
    // Predicated region
    $region38: #{tpu_custom_call.1} parent=1 // pred_check
      _
    $region39: #{tpu_custom_call.1} parent=1 // pred_check_branch
      %251 = sbr.rel (0) target = $region41
    $region40: #{tpu_custom_call.1} parent=1 // pred_region
      %252 = dma.done [#allocation4], 64
    $region41: #{tpu_custom_call.1} parent=1 // pred_fallthru
      _
    %253 = vsyncpa [#allocation3], 1
    %254 = vsyncpa [#allocation6], 1
    %255 = vsyncpa [#allocation4], 1

</llo_original>
